<compile_context>
chip_gen: v7x
topology: tpu7x:2x2x1
jax: 0.10.0
libtpu: 0.0.40
codegen_flags: <defaults>
</compile_context>

<pallas_src>
import jax
import jax.numpy as jnp
from jax.experimental import pallas as pl
from jax.experimental.pallas import tpu as pltpu


def _dma_identity_copy(xf, tb, nbuf=4):
    """Chunked HBM->HBM async-copy of `xf`, chunked along dim 0 in blocks of `tb` rows.

    Keeps up to `nbuf` DMAs in flight via a small DMA-semaphore ring; a static remainder
    chunk (if any) is copied after the full-size chunks have completed.
    """
    shape, dtype = xf.shape, xf.dtype
    leading = shape[0]
    n_full = leading // tb
    rem = leading - n_full * tb
    n_chunks = n_full + (1 if rem else 0)
    nbuf = max(1, min(nbuf, n_chunks))
    itemsize = jnp.dtype(dtype).itemsize
    trailing_idx = (slice(None),) * (len(shape) - 1)

    n_elems = 1
    for d in shape:
        n_elems *= d

    def kernel(x_hbm, o_hbm, sems):
        def chunk(i):
            idx = (pl.ds(i * tb, tb),) + trailing_idx
            return pltpu.make_async_copy(x_hbm.at[idx], o_hbm.at[idx], sems.at[i % nbuf])

        # Prime the ring: up to `nbuf` full-size DMAs in flight.
        for j in range(min(nbuf, n_full)):
            chunk(j).start()

        if n_full > 0:
            @pl.loop(0, n_full)
            def _(i):
                chunk(i).wait()

                @pl.when(i + nbuf < n_full)
                def _():
                    chunk(i + nbuf).start()

        if rem > 0:
            idx = (pl.ds(n_full * tb, rem),) + trailing_idx
            tail = pltpu.make_async_copy(
                x_hbm.at[idx], o_hbm.at[idx], sems.at[n_full % nbuf])
            tail.start()
            tail.wait()

    return pl.pallas_call(
        kernel,
        out_shape=jax.ShapeDtypeStruct(shape, dtype),
        in_specs=[pl.BlockSpec(memory_space=pl.ANY)],
        out_specs=pl.BlockSpec(memory_space=pl.ANY),
        scratch_shapes=[pltpu.SemaphoreType.DMA((nbuf,))],
        cost_estimate=pl.CostEstimate(
            flops=0, transcendentals=0, bytes_accessed=2 * n_elems * itemsize),
    )(xf)


def identity_pooling(x, *, force_copy=False, chunk_bytes=8 * 1024 * 1024):
    """JAX/Pallas equivalent of IdentityPooling_.forward.

    Default (force_copy=False): exact module semantics — returns (x, None, None) with no
    kernel launch and zero HBM traffic.

    force_copy=True: returns a value-identical fresh buffer produced by a chunked
    HBM->HBM DMA copy (no VMEM round trip, no TensorCore vector work).
    """
    if not force_copy:
        return x, None, None

    orig_shape = x.shape
    n = int(x.size)
    if n == 0:
        return x, None, None

    itemsize = jnp.dtype(x.dtype).itemsize
    if n % 128 == 0:
        xf = x.reshape(n // 128, 128)     # lane-dense 2-D view, chunked by rows
        row_bytes = 128 * itemsize
    else:
        # TODO(synk): awkward sizes fall back to a flat 1-D copy (still pure DMA, no VMEM).
        xf = x.reshape(n)
        row_bytes = itemsize

    tb = max(1, int(chunk_bytes) // row_bytes)
    tb = min(tb, xf.shape[0])

    out = _dma_identity_copy(xf, tb)
    return out.reshape(orig_shape), None, None


if __name__ == "__main__":
    key = jax.random.PRNGKey(0)
    B, Fin, V, X, Y, Z = 2, 2, 2, 8, 8, 8
    x = jax.random.normal(key, (B, Fin, V, X, Y, Z), dtype=jnp.float32)

    # 1) Default path: identity short-circuit, no kernel (matches torch semantics exactly).
    out, aux_spa, aux_sph = identity_pooling(x)
    assert out is x
    assert aux_spa is None and aux_sph is None

    # 2) Forced fresh buffer: single HBM->HBM DMA covering the whole tensor.
    out_c, _, _ = identity_pooling(x, force_copy=True)
    out_c = jax.block_until_ready(out_c)
    assert out_c.shape == x.shape and out_c.dtype == x.dtype
    assert jnp.array_equal(out_c, x), "identity copy mismatch (single DMA)"

    # 3) Forced fresh buffer with small chunks: exercises the multi-DMA ring pipeline.
    out_s, _, _ = identity_pooling(x, force_copy=True, chunk_bytes=4096)
    out_s = jax.block_until_ready(out_s)
    assert jnp.array_equal(out_s, x), "identity copy mismatch (chunked DMA ring)"

    print("KERNEL_OK")
</pallas_src>

<mosaic_0001>
module attributes {stable_mosaic.version = 11 : i64} {
  func.func @kernel(%arg0: memref<32x128xf32, #tpu.memory_space<any>>, %arg1: memref<32x128xf32, #tpu.memory_space<any>>, %arg2: memref<1x!tpu.dma_semaphore, #tpu.memory_space<semaphore_mem>>) attributes {dimension_semantics = [], scalar_prefetch = 0 : i64, scratch_operands = 1 : i64, tpu.core_type = #tpu.core_type<tc>} {
    %c0_i32 = arith.constant 0 : i32
    %c0_i32_0 = arith.constant 0 : i32
    %c0_i32_1 = arith.constant 0 : i32
    %0 = tpu.memref_slice %arg0[%c0_i32_0, %c0_i32_1] : memref<32x128xf32, #tpu.memory_space<any>> -> memref<32x128xf32, #tpu.memory_space<any>>
    %c0_i32_2 = arith.constant 0 : i32
    %c0_i32_3 = arith.constant 0 : i32
    %1 = tpu.memref_slice %arg1[%c0_i32_2, %c0_i32_3] : memref<32x128xf32, #tpu.memory_space<any>> -> memref<32x128xf32, #tpu.memory_space<any>>
    %2 = tpu.memref_slice %arg2[%c0_i32] : memref<1x!tpu.dma_semaphore, #tpu.memory_space<semaphore_mem>> -> memref<1x!tpu.dma_semaphore, #tpu.memory_space<semaphore_mem>>
    %3 = tpu.memref_squeeze %2 : memref<1x!tpu.dma_semaphore, #tpu.memory_space<semaphore_mem>> -> memref<!tpu.dma_semaphore, #tpu.memory_space<semaphore_mem>>
    tpu.enqueue_dma source(%0 : memref<32x128xf32, #tpu.memory_space<any>>) target(%1 : memref<32x128xf32, #tpu.memory_space<any>>) target_semaphore(%3 : memref<!tpu.dma_semaphore, #tpu.memory_space<semaphore_mem>>)
    %c0_i32_4 = arith.constant 0 : i32
    %c1_i32 = arith.constant 1 : i32
    %4 = arith.muli %c0_i32_4, %c1_i32 : i32
    %c0_i32_5 = arith.constant 0 : i32
    %5 = arith.addi %c0_i32_5, %4 : i32
    %c32_i32 = arith.constant 32 : i32
    %6 = arith.muli %5, %c32_i32 : i32
    %c1_i32_6 = arith.constant 1 : i32
    %c0_i32_7 = arith.constant 0 : i32
    %7 = arith.cmpi eq, %c1_i32_6, %c0_i32_7 : i32
    %c1_i32_8 = arith.constant 1 : i32
    %8 = arith.select %7, %c1_i32_8, %c1_i32_6 : i32
    %9 = arith.remsi %5, %8 : i32
    %c0_i32_9 = arith.constant 0 : i32
    %10 = arith.cmpi ne, %9, %c0_i32_9 : i32
    %c0_i32_10 = arith.constant 0 : i32
    %11 = arith.cmpi slt, %9, %c0_i32_10 : i32
    %c0_i32_11 = arith.constant 0 : i32
    %12 = arith.cmpi slt, %8, %c0_i32_11 : i32
    %13 = arith.xori %11, %12 : i1
    %14 = arith.andi %13, %10 : i1
    %15 = arith.addi %9, %8 : i32
    %16 = arith.select %14, %15, %9 : i32
    %c0_i32_12 = arith.constant 0 : i32
    %17 = tpu.memref_slice %arg0[%6, %c0_i32_12] : memref<32x128xf32, #tpu.memory_space<any>> -> memref<32x128xf32, #tpu.memory_space<any>>
    %c0_i32_13 = arith.constant 0 : i32
    %18 = tpu.memref_slice %arg1[%6, %c0_i32_13] : memref<32x128xf32, #tpu.memory_space<any>> -> memref<32x128xf32, #tpu.memory_space<any>>
    %19 = tpu.memref_slice %arg2[%16] : memref<1x!tpu.dma_semaphore, #tpu.memory_space<semaphore_mem>> -> memref<1x!tpu.dma_semaphore, #tpu.memory_space<semaphore_mem>>
    %20 = tpu.memref_squeeze %19 : memref<1x!tpu.dma_semaphore, #tpu.memory_space<semaphore_mem>> -> memref<!tpu.dma_semaphore, #tpu.memory_space<semaphore_mem>>
    tpu.wait_dma2 semaphore(%20 : memref<!tpu.dma_semaphore, #tpu.memory_space<semaphore_mem>>) src(%17 : memref<32x128xf32, #tpu.memory_space<any>>) dst(%18 : memref<32x128xf32, #tpu.memory_space<any>>)
    %c1_i32_14 = arith.constant 1 : i32
    %21 = arith.addi %5, %c1_i32_14 : i32
    %c1_i32_15 = arith.constant 1 : i32
    %22 = arith.cmpi slt, %21, %c1_i32_15 : i32
    %23 = arith.extui %22 : i1 to i32
    %c0_i32_16 = arith.constant 0 : i32
    %24 = arith.cmpi ne, %23, %c0_i32_16 : i32
    scf.if %24 {
      %c1_i32_18 = arith.constant 1 : i32
      %25 = arith.addi %5, %c1_i32_18 : i32
      %c32_i32_19 = arith.constant 32 : i32
      %26 = arith.muli %25, %c32_i32_19 : i32
      %c1_i32_20 = arith.constant 1 : i32
      %c0_i32_21 = arith.constant 0 : i32
      %27 = arith.cmpi eq, %c1_i32_20, %c0_i32_21 : i32
      %c1_i32_22 = arith.constant 1 : i32
      %28 = arith.select %27, %c1_i32_22, %c1_i32_20 : i32
      %29 = arith.remsi %25, %28 : i32
      %c0_i32_23 = arith.constant 0 : i32
      %30 = arith.cmpi ne, %29, %c0_i32_23 : i32
      %c0_i32_24 = arith.constant 0 : i32
      %31 = arith.cmpi slt, %29, %c0_i32_24 : i32
      %c0_i32_25 = arith.constant 0 : i32
      %32 = arith.cmpi slt, %28, %c0_i32_25 : i32
      %33 = arith.xori %31, %32 : i1
      %34 = arith.andi %33, %30 : i1
      %35 = arith.addi %29, %28 : i32
      %36 = arith.select %34, %35, %29 : i32
      %c0_i32_26 = arith.constant 0 : i32
      %37 = tpu.memref_slice %arg0[%26, %c0_i32_26] : memref<32x128xf32, #tpu.memory_space<any>> -> memref<32x128xf32, #tpu.memory_space<any>>
      %c0_i32_27 = arith.constant 0 : i32
      %38 = tpu.memref_slice %arg1[%26, %c0_i32_27] : memref<32x128xf32, #tpu.memory_space<any>> -> memref<32x128xf32, #tpu.memory_space<any>>
      %39 = tpu.memref_slice %arg2[%36] : memref<1x!tpu.dma_semaphore, #tpu.memory_space<semaphore_mem>> -> memref<1x!tpu.dma_semaphore, #tpu.memory_space<semaphore_mem>>
      %40 = tpu.memref_squeeze %39 : memref<1x!tpu.dma_semaphore, #tpu.memory_space<semaphore_mem>> -> memref<!tpu.dma_semaphore, #tpu.memory_space<semaphore_mem>>
      tpu.enqueue_dma source(%37 : memref<32x128xf32, #tpu.memory_space<any>>) target(%38 : memref<32x128xf32, #tpu.memory_space<any>>) target_semaphore(%40 : memref<!tpu.dma_semaphore, #tpu.memory_space<semaphore_mem>>)
    } else {
    }
    %c1_i32_17 = arith.constant 1 : i32
    return
  }
}

</mosaic_0001>

<llo_original>
// kernel: tpu_custom_call.1
$region0: #{tpu_custom_call.1}
  #allocation0 [shape = 'u32[]', space=smem, size = 0x4, offset = 0x4, fixed_abs, tag = 'smem constant byte address 0x4 - core index']
  #allocation1 [shape = 'u32[144,128]{1,0:T(1,128)}', space=vmem, size = 0x12000, scoped, tag = 'internal scratch']
  #allocation2 [shape = 's32[1]{0}', space=sflag, size = 0x4, scoped, tag = 'scratch operand']
  #allocation3 [shape = 's32[]', space=sflag, size = 0x4, offset = 0, fixed_abs, tag = 'sflag constant byte address 0x0 - dummy sync flag']
  #allocation4 [shape = 'u32[0]{0}', space=smem, size = 0, offset = 0, fixed_abs, tag = 'smem constant byte address 0x0 - null']
  %s0 = inlined_call_operand.hbm [shape: f32[32,128], index: 0, kind: input, shape index: {}]
  %s1 = inlined_call_operand.hbm [shape: f32[32,128], index: 1, kind: output, shape index: {}]
  %s2 = sld [smem:[#allocation0]]
  $region2: #{tpu_custom_call.1} parent=0
    _
  %s4 = ssub.s32 1, %s2
  %s5 = scalar_select 0, %s4, %s2
  %s7 = sshll.u32 1, 14
  %s8 = sxor.u32 4294967295, %s7
  %s11 = sshll.u32 3, 24
  %s12 = sxor.u32 4294967295, %s11
  %s13 = sand.u32 0, %s12
  %s15 = sor.u32 %s13, 0
  %18 = dma.general %s0, 512, %s1, [#allocation2], [#allocation3], [#allocation4], %s15, 0
  %s19 = smul.u32 32, 1
  %s20 = sshll.u32 %s19, 4
  %21 = dma.done [#allocation2], %s20
  %22 = vsyncmov [#allocation2]
  %s23 = vpop.sfrf %22
  %p24 = scmp.eq.s32.totalorder %s23, 0
  %p25 = pneg %p24
  %27 = shalt.err (%p25)

</llo_original>
